<compile_context>
chip_gen: v7x
topology: tpu7x:2x2x1
jax: 0.10.0
libtpu: 0.0.40
codegen_flags: <defaults>
</compile_context>

<pallas_src>
import jax
import jax.numpy as jnp
from jax.experimental import pallas as pl
from jax.experimental.pallas import tpu as pltpu

LANE = 128      # vreg lane width
SUBLANE = 8     # f32 sublane width
KGRAIN = 512    # K-tile granularity (multiple of LANE)


def _round_up(x, m):
    return (x + m - 1) // m * m


def _pick_tk(d_pad, n_pad, b_pad, budget_bytes):
    """Largest K-tile (multiple of KGRAIN, divisor of d_pad) whose
    double-buffered streaming state fits `budget_bytes`.

    Per unit of K the pipeline holds (double-buffered):
      bf16 weight tile : 2 * n_pad * 2 bytes
      bf16 x tile      : 2 * b_pad * 2 bytes
    """
    per_k = 2 * (n_pad * 2 + b_pad * 2)
    max_grains = max(1, (budget_bytes // per_k) // KGRAIN)
    num_grain = d_pad // KGRAIN
    grains = 1
    for cand in range(min(max_grains, num_grain), 0, -1):
        if num_grain % cand == 0:       # divisor of d_pad -> no over-padding
            grains = cand
            break
    return grains * KGRAIN


def _vmem_limit_bytes(tk, n_pad, b_pad):
    """Explicit scoped-VMEM limit from the actual double-buffered footprint."""
    footprint = (2 * tk * n_pad * 2        # bf16 weight tiles (double-buffered)
                 + 2 * b_pad * tk * 2      # bf16 x tiles      (double-buffered)
                 + 2 * b_pad * n_pad * 4)  # resident f32 output block(s)
    # 4 MiB margin for compiler-internal scratch; floor at 16 MiB (safe on all
    # generations), cap at v7x's 64 MiB physical VMEM.
    return int(min(64 << 20, max(footprint + (4 << 20), 16 << 20)))


def ensemble_kernel(x_ref, w_ref, out_ref):
    """One (model m, K-tile k) grid step.

    x_ref  : (b_pad, tk)     bf16  activation K-tile (shared across models)
    w_ref  : (tk, n_pad)     bf16  model m's fused [classifier | color] K-tile
    out_ref: (b_pad, n_pad)  f32   model m's raw head output, resident across
                                   the inner K ("arbitrary") axis
    """
    @pl.when(pl.program_id(1) == 0)
    def _():
        out_ref[...] = jnp.zeros_like(out_ref)

    # Single-pass bf16 MXU matmul, f32 accumulation into the resident block.
    out_ref[...] += jnp.dot(x_ref[...], w_ref[...],
                            preferred_element_type=jnp.float32)


def ensemble_forward(x, ens_weights, w_cls, b_cls, w_col, b_col, *,
                     tk=None, vmem_budget_bytes=12 * 1024 * 1024):
    """x: (B, C, H, W) NCHW.

    Returns (final_output, final_color_features) with the exact semantics of
    EnsembleModel.forward: sum_m w_m * logits_m  and  mean_m color_m.
    """
    B = x.shape[0]
    x_flat = x.reshape(B, -1)
    D = x_flat.shape[1]

    M, _, C = w_cls.shape
    F = w_col.shape[-1]
    N = C + F

    # Lane/sublane-dense padded problem sizes.
    n_pad = max(LANE, _round_up(N, LANE))
    b_pad = max(SUBLANE, _round_up(B, SUBLANE))

    if tk is None:
        d_pad = _round_up(D, KGRAIN)
        tk = _pick_tk(d_pad, n_pad, b_pad, vmem_budget_bytes)
    else:
        assert tk % LANE == 0, "tk must be a multiple of 128 (lane width)"
        d_pad = _round_up(D, tk)
    num_k = d_pad // tk

    # ---- pack / pad inputs (zero padding is exact) --------------------------
    # TODO(synk): for static parameters, cache this weight repack across calls
    # (it re-streams all M*D*N weights through XLA on every invocation).
    x_p = (jnp.zeros((b_pad, d_pad), jnp.bfloat16)
              .at[:B, :D].set(x_flat.astype(jnp.bfloat16)))
    w_fused = jnp.concatenate([w_cls, w_col], axis=-1)            # (M, D, N)
    w_p = (jnp.zeros((M, d_pad, n_pad), jnp.bfloat16)
              .at[:, :D, :N].set(w_fused.astype(jnp.bfloat16)))

    grid_spec = pltpu.PrefetchScalarGridSpec(
        num_scalar_prefetch=0,
        grid=(M, num_k),                 # M: parallel (megacore), K: reduction
        in_specs=[
            pl.BlockSpec((b_pad, tk), lambda m, k: (0, k)),        # x K-tile
            pl.BlockSpec((None, tk, n_pad), lambda m, k: (m, k, 0)),  # weights
        ],
        out_specs=pl.BlockSpec((None, b_pad, n_pad),
                               lambda m, k: (m, 0, 0)),            # resident acc
    )

    partials = pl.pallas_call(
        ensemble_kernel,
        grid_spec=grid_spec,
        out_shape=jax.ShapeDtypeStruct((M, b_pad, n_pad), jnp.float32),
        compiler_params=pltpu.CompilerParams(
            dimension_semantics=("parallel", "arbitrary"),
            vmem_limit_bytes=_vmem_limit_bytes(tk, n_pad, b_pad)),
    )(x_p, w_p)

    # Tiny (M, B, N) combine: ensemble weights on the classifier columns,
    # 1/M (mean) on the color-feature columns, plus the reduced biases.
    ens_w = ens_weights.astype(jnp.float32)
    scale = jnp.concatenate(
        [jnp.broadcast_to(ens_w[:, None], (M, C)),
         jnp.full((M, F), 1.0 / M, jnp.float32)], axis=-1)         # (M, N)
    b_comb = jnp.concatenate(
        [jnp.sum(ens_w[:, None] * b_cls.astype(jnp.float32), axis=0),
         jnp.mean(b_col.astype(jnp.float32), axis=0)])             # (N,)
    fused = jnp.sum(partials[:, :B, :N] * scale[:, None, :], axis=0) + b_comb

    final_output = fused[:, :C]
    final_color_features = fused[:, C:]
    return final_output, final_color_features


if __name__ == "__main__":
    # Small shapes consistent with the forward: NCHW input, M ensemble members.
    B, Cin, H, W = 2, 4, 16, 16
    M = 3            # number of models in the ensemble
    C = 2            # classifier output size (real / fake)
    F = 32           # color-feature dimension
    D = Cin * H * W

    key = jax.random.PRNGKey(0)
    kx, k1, k2, k3, k4 = jax.random.split(key, 5)

    x = jax.random.normal(kx, (B, Cin, H, W), dtype=jnp.float32)

    # Deterministic synthetic parameters for each sub-model.
    w_cls = 0.02 * jax.random.normal(k1, (M, D, C), dtype=jnp.float32)
    b_cls = 0.02 * jax.random.normal(k2, (M, C), dtype=jnp.float32)
    w_col = 0.02 * jax.random.normal(k3, (M, D, F), dtype=jnp.float32)
    b_col = 0.02 * jax.random.normal(k4, (M, F), dtype=jnp.float32)

    # EnsembleModel default: weights = ones(M) / M.
    ens_weights = jnp.ones((M,), dtype=jnp.float32) / M

    # tk=512 -> 2 K-tiles at D=1024, exercising the resident-accumulator path.
    final_output, final_color = ensemble_forward(
        x, ens_weights, w_cls, b_cls, w_col, b_col, tk=512)
    jax.block_until_ready((final_output, final_color))

    # Pure-JAX reference: same math as EnsembleModel.forward.  The kernel
    # streams both x and the weights in bf16 (f32 accumulation), so the
    # reference uses the same bf16-quantized operands upcast to f32.
    xf = x.reshape(B, D).astype(jnp.bfloat16).astype(jnp.float32)
    w_cls_q = w_cls.astype(jnp.bfloat16).astype(jnp.float32)
    w_col_q = w_col.astype(jnp.bfloat16).astype(jnp.float32)
    outs = jnp.einsum("bd,mdc->mbc", xf, w_cls_q,
                      precision=jax.lax.Precision.HIGHEST) + b_cls[:, None, :]
    cols = jnp.einsum("bd,mdf->mbf", xf, w_col_q,
                      precision=jax.lax.Precision.HIGHEST) + b_col[:, None, :]
    ref_out = jnp.sum(outs * ens_weights[:, None, None], axis=0)
    ref_col = jnp.mean(cols, axis=0)

    assert jnp.allclose(final_output, ref_out, atol=2e-3, rtol=2e-3), \
        "final_output mismatch"
    assert jnp.allclose(final_color, ref_col, atol=2e-3, rtol=2e-3), \
        "final_color_features mismatch"

    print("KERNEL_OK")
</pallas_src>

<mosaic_0001>
module attributes {stable_mosaic.version = 11 : i64} {
  func.func @ensemble_kernel(%arg0: i32, %arg1: i32, %arg2: memref<8x512xbf16, #tpu.memory_space<vmem>>, %arg3: memref<1x512x128xbf16, #tpu.memory_space<vmem>>, %arg4: memref<1x8x128xf32, #tpu.memory_space<vmem>>) attributes {dimension_semantics = [#tpu.dimension_semantics<parallel>, #tpu.dimension_semantics<arbitrary>], iteration_bounds = array<i64: 3, 2>, scalar_prefetch = 0 : i64, scratch_operands = 0 : i64, tpu.core_type = #tpu.core_type<tc>, window_params = [{transform_indices = @transform_0, window_bounds = array<i64: 8, 512>}, {transform_indices = @transform_1, window_bounds = array<i64: 1, 512, 128>}, {transform_indices = @transform_2, window_bounds = array<i64: 1, 8, 128>}]} {
    %c0_i32 = arith.constant 0 : i32
    %0 = arith.cmpi eq, %arg1, %c0_i32 : i32
    %1 = arith.extui %0 : i1 to i32
    %c0_i32_0 = arith.constant 0 : i32
    %2 = arith.cmpi ne, %1, %c0_i32_0 : i32
    scf.if %2 {
      %cst_11 = arith.constant 0.000000e+00 : f32
      %13 = vector.broadcast %cst_11 : f32 to vector<8x128xf32>
      %c0_12 = arith.constant 0 : index
      %c0_13 = arith.constant 0 : index
      %c0_14 = arith.constant 0 : index
      %14 = vector.load %arg4[%c0_12, %c0_13, %c0_14] : memref<1x8x128xf32, #tpu.memory_space<vmem>>, vector<1x8x128xf32>
      %15 = vector.shape_cast %14 : vector<1x8x128xf32> to vector<8x128xf32>
      %16 = vector.shape_cast %13 : vector<8x128xf32> to vector<1x8x128xf32>
      tpu.vector_store %arg4[%c0_12, %c0_13, %c0_14], %16 {strides = array<i32>} : memref<1x8x128xf32, #tpu.memory_space<vmem>>, vector<1x8x128xf32>,
    } else {
    }
    %c0 = arith.constant 0 : index
    %c0_1 = arith.constant 0 : index
    %c0_2 = arith.constant 0 : index
    %3 = vector.load %arg4[%c0, %c0_1, %c0_2] : memref<1x8x128xf32, #tpu.memory_space<vmem>>, vector<1x8x128xf32>
    %4 = vector.shape_cast %3 : vector<1x8x128xf32> to vector<8x128xf32>
    %c0_3 = arith.constant 0 : index
    %c0_4 = arith.constant 0 : index
    %5 = vector.load %arg2[%c0_3, %c0_4] : memref<8x512xbf16, #tpu.memory_space<vmem>>, vector<8x512xbf16>
    %c0_5 = arith.constant 0 : index
    %c0_6 = arith.constant 0 : index
    %c0_7 = arith.constant 0 : index
    %6 = vector.load %arg3[%c0_5, %c0_6, %c0_7] : memref<1x512x128xbf16, #tpu.memory_space<vmem>>, vector<1x512x128xbf16>
    %7 = vector.shape_cast %6 : vector<1x512x128xbf16> to vector<512x128xbf16>
    %cst = arith.constant dense<0.000000e+00> : vector<8x128xf32>
    %8 = tpu.matmul %5, %7, %cst {dimension_numbers = #tpu.dot_dimension_numbers<[1], [0], [0], [1], [0, 0, 1, 1], [], []>} : vector<8x512xbf16>, vector<512x128xbf16>, vector<8x128xf32> -> vector<8x128xf32>
    %9 = arith.addf %4, %8 : vector<8x128xf32>
    %c0_8 = arith.constant 0 : index
    %c0_9 = arith.constant 0 : index
    %c0_10 = arith.constant 0 : index
    %10 = vector.load %arg4[%c0_8, %c0_9, %c0_10] : memref<1x8x128xf32, #tpu.memory_space<vmem>>, vector<1x8x128xf32>
    %11 = vector.shape_cast %10 : vector<1x8x128xf32> to vector<8x128xf32>
    %12 = vector.shape_cast %9 : vector<8x128xf32> to vector<1x8x128xf32>
    tpu.vector_store %arg4[%c0_8, %c0_9, %c0_10], %12 {strides = array<i32>} : memref<1x8x128xf32, #tpu.memory_space<vmem>>, vector<1x8x128xf32>,
    return
  }
  func.func @transform_0(%arg0: i32, %arg1: i32) -> (i32, i32) {
    %c0_i32 = arith.constant 0 : i32
    %c0_i32_0 = arith.constant 0 : i32
    return %c0_i32, %arg1 : i32, i32
  }
  func.func @transform_1(%arg0: i32, %arg1: i32) -> (i32, i32, i32) {
    %c0_i32 = arith.constant 0 : i32
    %c0_i32_0 = arith.constant 0 : i32
    return %arg0, %arg1, %c0_i32 : i32, i32, i32
  }
  func.func @transform_2(%arg0: i32, %arg1: i32) -> (i32, i32, i32) {
    %c0_i32 = arith.constant 0 : i32
    %c0_i32_0 = arith.constant 0 : i32
    %c0_i32_1 = arith.constant 0 : i32
    return %arg0, %c0_i32, %c0_i32_0 : i32, i32, i32
  }
}

</mosaic_0001>

<llo_original>
// kernel: tpu_custom_call.1
$region0: #{tpu_custom_call.1}
  #allocation0 [shape = 'u32[]', space=smem, size = 0x4, offset = 0x4, fixed_abs, tag = 'smem constant byte address 0x4 - core index']
  #allocation1 [shape = 'u32[144,128]{1,0:T(1,128)}', space=vmem, size = 0x12000, scoped, tag = 'internal scratch']
  %s0 = inlined_call_operand.hbm [shape: bf16[8,1024], index: 0, kind: input, shape index: {}]
  %s1 = inlined_call_operand.hbm [shape: bf16[3,1024,128], index: 1, kind: input, shape index: {}]
  %s2 = inlined_call_operand.hbm [shape: f32[3,8,128], index: 2, kind: output, shape index: {}]
  %s3 = sld [smem:[#allocation0]]
  $region53: #{tpu_custom_call.1} parent=0
    _
  %s5 = ssub.s32 1, %s3
  %s6 = scalar_select 0, %s5, %s3
  $region1: #{tpu_custom_call.1} parent=0
    #allocation2 [shape = 'u8[16384]{0}', space=vmem, size = 0x4000, scoped, tag = 'input window, operand 0']
    #allocation3 [shape = 's32[2]{0}', space=sflag, size = 0x8, scoped, tag = 'scoped memory for tpu_custom_call.1']
    #allocation4 [shape = 's32[2]{0}', space=sflag, size = 0x8, scoped, tag = 'scoped memory for tpu_custom_call.1']
    #allocation5 [shape = 'u8[262144]{0}', space=vmem, size = 0x40000, scoped, tag = 'input window, operand 1']
    #allocation6 [shape = 's32[2]{0}', space=sflag, size = 0x8, scoped, tag = 'scoped memory for tpu_custom_call.1']
    #allocation7 [shape = 'u8[8192]{0}', space=vmem, size = 0x2000, scoped, tag = 'output window, operand 0']
    %7 = vsyncpa [#allocation3], 0
    %s8 = scalar_lea.sflag [#allocation3], 1
    %9 = vsyncpa %s8, 0
    %10 = vsyncpa [#allocation6], 0
    %s11 = scalar_lea.sflag [#allocation6], 1
    %12 = vsyncpa %s11, 0
    %13 = vsyncpa [#allocation4], 0
    %s14 = scalar_lea.sflag [#allocation4], 1
    %15 = vsyncpa %s14, 0
    loop: start=0, step=1, limit=8
    $region2: #{tpu_custom_call.1} parent=1 // loop_pre_header
      _
    $region3: #{tpu_custom_call.1} parent=1 // loop_header
      %s17 = sphi 0, %s21
      %p18 = scmp.ge.s32.totalorder %s17, 8
      %s24 = sphi 0, %s36
      %s25 = sphi 0, %s32
      %s26 = sphi 0, %s24
      %s27 = sphi 0, %s25
      %s28 = sphi 0, %s26
      %s29 = sphi 0, %s27
      %s39 = sphi 0, %s41
      %s42 = sphi 0, %s39
      %s43 = sphi 0, %s42
      %s59 = sphi 0, %s43
      %s67 = sphi 0, %s69
      %s70 = sphi 0, %s67
      %s71 = sphi 0, %s70
      %s87 = sphi 0, %s71
      %s93 = sphi 0, %s95
      %s96 = sphi 0, %s93
      %s97 = sphi 0, %s96
      %s113 = sphi 0, %s97
    $region4: #{tpu_custom_call.1} parent=1 // loop_header_branch
      %20 = sbr.rel (%p18) target = $region8
    $region5: #{tpu_custom_call.1} parent=1 // loop_body
      %s22 = ssub.s32 %s17, 1
      %s23 = ssub.s32 %s17, 2
      %s30 = sadd.s32 1, %s25
      %p31 = scmp.ge.s32.totalorder %s30, 2
      %s32 = scalar_select %p31, 0, %s30
      %s33 = sadd.s32 1, %s24
      %s34 = scalar_select %p31, %s33, %s24
      %p35 = scmp.ge.s32.totalorder %s34, 3
      %s36 = scalar_select %p35, 0, %s34
      %s37 = ssub.s32 %s25, %s32
      %p38 = scmp.eq.s32.totalorder %s37, 0
      %s40 = sadd.s32 %s39, 1
      %s41 = scalar_select %p38, %s39, %s40
      %p44 = pneg %p38
      %p45 = scmp.eq.s32.totalorder %s17, 5
      %p46 = por %p44, %p45
      %p47 = scmp.ne.s32.totalorder %s39, %s42
      %p48 = scmp.eq.s32.totalorder %s17, 0
      %p49 = por %p47, %p48
      %p50 = scmp.ne.s32.totalorder %s39, %s42
      %p51 = scmp.eq.s32.totalorder %s22, 5
      %p52 = por %p50, %p51
      %p53 = scmp.ne.s32.totalorder %s42, %s43
      %p54 = scmp.eq.s32.totalorder %s22, 0
      %p55 = por %p53, %p54
      %p56 = scmp.ne.s32.totalorder %s42, %s43
      %p57 = scmp.eq.s32.totalorder %s23, 5
      %p58 = por %p56, %p57
      %p60 = scmp.ne.s32.totalorder %s43, %s59
      %p61 = scmp.eq.s32.totalorder %s23, 0
      %p62 = por %p60, %p61
      %s63 = ssub.s32 %s24, %s36
      %s64 = ssub.s32 %s25, %s32
      %s65 = sor.u32 %s63, %s64
      %p66 = scmp.eq.s32.totalorder %s65, 0
      %s68 = sadd.s32 %s67, 1
      %s69 = scalar_select %p66, %s67, %s68
      %p72 = pneg %p66
      %p73 = scmp.eq.s32.totalorder %s17, 5
      %p74 = por %p72, %p73
      %p75 = scmp.ne.s32.totalorder %s67, %s70
      %p76 = scmp.eq.s32.totalorder %s17, 0
      %p77 = por %p75, %p76
      %p78 = scmp.ne.s32.totalorder %s67, %s70
      %p79 = scmp.eq.s32.totalorder %s22, 5
      %p80 = por %p78, %p79
      %p81 = scmp.ne.s32.totalorder %s70, %s71
      %p82 = scmp.eq.s32.totalorder %s22, 0
      %p83 = por %p81, %p82
      %p84 = scmp.ne.s32.totalorder %s70, %s71
      %p85 = scmp.eq.s32.totalorder %s23, 5
      %p86 = por %p84, %p85
      %p88 = scmp.ne.s32.totalorder %s71, %s87
      %p89 = scmp.eq.s32.totalorder %s23, 0
      %p90 = por %p88, %p89
      %s91 = ssub.s32 %s24, %s36
      %p92 = scmp.eq.s32.totalorder %s91, 0
      %s94 = sadd.s32 %s93, 1
      %s95 = scalar_select %p92, %s93, %s94
      %p98 = pneg %p92
      %p99 = scmp.eq.s32.totalorder %s17, 5
      %p100 = por %p98, %p99
      %p101 = scmp.ne.s32.totalorder %s93, %s96
      %p102 = scmp.eq.s32.totalorder %s17, 0
      %p103 = por %p101, %p102
      %p104 = scmp.ne.s32.totalorder %s93, %s96
      %p105 = scmp.eq.s32.totalorder %s22, 5
      %p106 = por %p104, %p105
      %p107 = scmp.ne.s32.totalorder %s96, %s97
      %p108 = scmp.eq.s32.totalorder %s22, 0
      %p109 = por %p107, %p108
      %p110 = scmp.ne.s32.totalorder %s96, %s97
      %p111 = scmp.eq.s32.totalorder %s23, 5
      %p112 = por %p110, %p111
      %p114 = scmp.ne.s32.totalorder %s97, %s113
      %p115 = scmp.eq.s32.totalorder %s23, 0
      %p116 = por %p114, %p115
      %p117 = scmp.le.s32.totalorder 1, %s17
      %p118 = scmp.lt.s32.totalorder %s17, 7
      %p119 = pnand %p117, %p118
      %p120 = pneg %p119
      // Predicated region
      $region9: #{tpu_custom_call.1} parent=5 // pred_check
        _
      $region10: #{tpu_custom_call.1} parent=5 // pred_check_branch
        %122 = sbr.rel (%p119) target = $region12
      $region11: #{tpu_custom_call.1} parent=5 // pred_region
        %s123 = ssub.s32 %s17, 1
      $region12: #{tpu_custom_call.1} parent=5 // pred_fallthru
        _
      %p124 = scmp.lt.s32.totalorder %s17, 6
      // Predicated region
      $region13: #{tpu_custom_call.1} parent=5 // pred_check
        %p125 = pneg %p124
      $region14: #{tpu_custom_call.1} parent=5 // pred_check_branch
        %127 = sbr.rel (%p125) target = $region16
      $region15: #{tpu_custom_call.1} parent=5 // pred_region
        // Predicated region
        $region17: #{tpu_custom_call.1} parent=15 // pred_check
          %p128 = pneg %p49
        $region18: #{tpu_custom_call.1} parent=15 // pred_check_branch
          %130 = sbr.rel (%p128) target = $region20
        $region19: #{tpu_custom_call.1} parent=15 // pred_region
          %s131 = sand.u32 %s39, 1
          %s132 = scalar_lea.sflag [#allocation3], %s131
          %s133 = sand.u32 %s39, 1
          %s134 = smul.addr %s133, 16
          %s135 = scalar_lea.vmem [#allocation2], %s134
          %s136 = smul.u32 4, %s25
          %s138 = ssub.s32 256, 256
          %139 = vsyncadd %s132, %s138
          %s140 = smul.addr %s136, 64
          %s141 = scalar_lea.hbm %s0, %s140
          %s143 = sshll.u32 %s135, 4
          %s144 = int_to_ptr.vmem [resolvable:$true] %s143
          %146 = dma.hbm_to_vmem [thread:$0]  %s141, 256, %s144, %s132
        $region20: #{tpu_custom_call.1} parent=15 // pred_fallthru
          _
        // Predicated region
        $region21: #{tpu_custom_call.1} parent=15 // pred_check
          %p147 = pneg %p77
        $region22: #{tpu_custom_call.1} parent=15 // pred_check_branch
          %149 = sbr.rel (%p147) target = $region24
        $region23: #{tpu_custom_call.1} parent=15 // pred_region
          %s150 = sand.u32 %s67, 1
          %s151 = scalar_lea.sflag [#allocation6], %s150
          %s152 = sand.u32 %s67, 1
          %s153 = smul.addr %s152, 256
          %s154 = scalar_lea.vmem [#allocation5], %s153
          %s155 = smul.u32 64, %s25
          %s157 = ssub.s32 4096, 4096
          %158 = vsyncadd %s151, %s157
          %s159 = smul.addr %s24, 128
          %s160 = sadd.s32 %s155, %s159
          %s161 = smul.addr %s160, 64
          %s162 = scalar_lea.hbm %s1, %s161
          %s163 = sshll.u32 %s154, 4
          %s164 = int_to_ptr.vmem [resolvable:$true] %s163
          %169 = dma.hbm_to_vmem [thread:$0]  %s162, 4096, %s164, %s151, 64, 64, 4
        $region24: #{tpu_custom_call.1} parent=15 // pred_fallthru
          _
      $region16: #{tpu_custom_call.1} parent=5 // pred_fallthru
        _
      %p170 = scmp.le.s32.totalorder 1, %s17
      %p171 = scmp.lt.s32.totalorder %s17, 7
      %p172 = pnand %p170, %p171
      %p173 = pneg %p172
      // Predicated region
      $region25: #{tpu_custom_call.1} parent=5 // pred_check
        _
      $region26: #{tpu_custom_call.1} parent=5 // pred_check_branch
        %175 = sbr.rel (%p172) target = $region28
      $region27: #{tpu_custom_call.1} parent=5 // pred_region
        %s176 = ssub.s32 %s17, 1
        %s177 = sand.u32 %s42, 1
        %s178 = scalar_lea.sflag [#allocation3], %s177
        %s179 = sand.u32 %s42, 1
        %s180 = smul.addr %s179, 16
        %s181 = scalar_lea.vmem [#allocation2], %s180
        // Predicated region
        $region29: #{tpu_custom_call.1} parent=27 // pred_check
          %p182 = pneg %p55
        $region30: #{tpu_custom_call.1} parent=27 // pred_check_branch
          %184 = sbr.rel (%p182) target = $region32
        $region31: #{tpu_custom_call.1} parent=27 // pred_region
          %185 = dma.done %s178, 256
        $region32: #{tpu_custom_call.1} parent=27 // pred_fallthru
          _
        %s186 = sand.u32 %s70, 1
        %s187 = scalar_lea.sflag [#allocation6], %s186
        %s188 = sand.u32 %s70, 1
        %s189 = smul.addr %s188, 256
        %s190 = scalar_lea.vmem [#allocation5], %s189
        // Predicated region
        $region33: #{tpu_custom_call.1} parent=27 // pred_check
          %p191 = pneg %p83
        $region34: #{tpu_custom_call.1} parent=27 // pred_check_branch
          %193 = sbr.rel (%p191) target = $region36
        $region35: #{tpu_custom_call.1} parent=27 // pred_region
          %194 = dma.done %s187, 4096
        $region36: #{tpu_custom_call.1} parent=27 // pred_fallthru
          _
        %s195 = sand.u32 %s42, 1
        %s196 = scalar_lea.sflag [#allocation3], %s195
        %s197 = sand.u32 %s42, 1
        %s198 = smul.addr %s197, 16
        %s199 = scalar_lea.vmem [#allocation2], %s198
        %p200 = pneg %p55
        %p201 = pneg %p52
        %s202 = sand.u32 %s70, 1
        %s203 = scalar_lea.sflag [#allocation6], %s202
        %s204 = sand.u32 %s70, 1
        %s205 = smul.addr %s204, 256
        %s206 = scalar_lea.vmem [#allocation5], %s205
        %p207 = pneg %p83
        %p208 = pneg %p80
        %p209 = pneg %p109
        %p210 = pneg %p106
        %s211 = sand.u32 %s96, 1
        %s212 = scalar_lea.sflag [#allocation4], %s211
        %s213 = sand.u32 %s96, 1
        %s214 = smul.addr %s213, 8
        %s215 = scalar_lea.vmem [#allocation7], %s214
        %s216 = smul.u32 4, %s27
        %s217 = smul.u32 64, %s27
        %p219 = scmp.eq.s32.totalorder %s27, 0
        // Predicated region
        $region37: #{tpu_custom_call.1} parent=27 // pred_check
          %p220 = pneg %p219
        $region38: #{tpu_custom_call.1} parent=27 // pred_check_branch
          %222 = sbr.rel (%p220) target = $region40
        $region39: #{tpu_custom_call.1} parent=27 // pred_region
          %223 = vst [vmem:[%s215] sm:$0xff] 0.0
        $region40: #{tpu_custom_call.1} parent=27 // pred_fallthru
          _
        %v224 = vld [vmem:[%s215] sm:$0xff]
        %v225 = vld [vmem:[%s181] sm:$0xff]
        %v226 = vld [vmem:[%s181 + $0x8] sm:$0xff]
        %v227 = vld [vmem:[%s190] sm:$0xf]
        %v228 = vld [vmem:[%s190 + $0x4] sm:$0xf]
        %v229 = vld [vmem:[%s190 + $0x8] sm:$0xf]
        %v230 = vld [vmem:[%s190 + $0xc] sm:$0xf]
        %v231 = vld [vmem:[%s190 + $0x10] sm:$0xf]
        %v232 = vld [vmem:[%s190 + $0x14] sm:$0xf]
        %v233 = vld [vmem:[%s190 + $0x18] sm:$0xf]
        %v234 = vld [vmem:[%s190 + $0x1c] sm:$0xf]
        %v235 = vld [vmem:[%s190 + $0x20] sm:$0xf]
        %v236 = vld [vmem:[%s190 + $0x24] sm:$0xf]
        %v237 = vld [vmem:[%s190 + $0x28] sm:$0xf]
        %v238 = vld [vmem:[%s190 + $0x2c] sm:$0xf]
        %v239 = vld [vmem:[%s190 + $0x30] sm:$0xf]
        %v240 = vld [vmem:[%s190 + $0x34] sm:$0xf]
        %v241 = vld [vmem:[%s190 + $0x38] sm:$0xf]
        %v242 = vld [vmem:[%s190 + $0x3c] sm:$0xf]
        %v243 = vld [vmem:[%s190 + $0x40] sm:$0xf]
        %v244 = vld [vmem:[%s190 + $0x44] sm:$0xf]
        %v245 = vld [vmem:[%s190 + $0x48] sm:$0xf]
        %v246 = vld [vmem:[%s190 + $0x4c] sm:$0xf]
        %v247 = vld [vmem:[%s190 + $0x50] sm:$0xf]
        %v248 = vld [vmem:[%s190 + $0x54] sm:$0xf]
        %v249 = vld [vmem:[%s190 + $0x58] sm:$0xf]
        %v250 = vld [vmem:[%s190 + $0x5c] sm:$0xf]
        %v251 = vld [vmem:[%s190 + $0x60] sm:$0xf]
        %v252 = vld [vmem:[%s190 + $0x64] sm:$0xf]
        %v253 = vld [vmem:[%s190 + $0x68] sm:$0xf]
        %v254 = vld [vmem:[%s190 + $0x6c] sm:$0xf]
        %v255 = vld [vmem:[%s190 + $0x70] sm:$0xf]
        %v256 = vld [vmem:[%s190 + $0x74] sm:$0xf]
        %v257 = vld [vmem:[%s190 + $0x78] sm:$0xf]
        %v258 = vld [vmem:[%s190 + $0x7c] sm:$0xf]
        %v259 = vld [vmem:[%s190 + $0x80] sm:$0xf]
        %v260 = vld [vmem:[%s190 + $0x84] sm:$0xf]
        %v261 = vld [vmem:[%s190 + $0x88] sm:$0xf]
        %v262 = vld [vmem:[%s190 + $0x8c] sm:$0xf]
        %v263 = vld [vmem:[%s190 + $0x90] sm:$0xf]
        %v264 = vld [vmem:[%s190 + $0x94] sm:$0xf]
        %v265 = vld [vmem:[%s190 + $0x98] sm:$0xf]
        %v266 = vld [vmem:[%s190 + $0x9c] sm:$0xf]
        %v267 = vld [vmem:[%s190 + $0xa0] sm:$0xf]
        %v268 = vld [vmem:[%s190 + $0xa4] sm:$0xf]
        %v269 = vld [vmem:[%s190 + $0xa8] sm:$0xf]
        %v270 = vld [vmem:[%s190 + $0xac] sm:$0xf]
        %v271 = vld [vmem:[%s190 + $0xb0] sm:$0xf]
        %v272 = vld [vmem:[%s190 + $0xb4] sm:$0xf]
        %v273 = vld [vmem:[%s190 + $0xb8] sm:$0xf]
        %v274 = vld [vmem:[%s190 + $0xbc] sm:$0xf]
        %v275 = vld [vmem:[%s190 + $0xc0] sm:$0xf]
        %v276 = vld [vmem:[%s190 + $0xc4] sm:$0xf]
        %v277 = vld [vmem:[%s190 + $0xc8] sm:$0xf]
        %v278 = vld [vmem:[%s190 + $0xcc] sm:$0xf]
        %v279 = vld [vmem:[%s190 + $0xd0] sm:$0xf]
        %v280 = vld [vmem:[%s190 + $0xd4] sm:$0xf]
        %v281 = vld [vmem:[%s190 + $0xd8] sm:$0xf]
        %v282 = vld [vmem:[%s190 + $0xdc] sm:$0xf]
        %v283 = vld [vmem:[%s190 + $0xe0] sm:$0xf]
        %v284 = vld [vmem:[%s190 + $0xe4] sm:$0xf]
        %v285 = vld [vmem:[%s190 + $0xe8] sm:$0xf]
        %v286 = vld [vmem:[%s190 + $0xec] sm:$0xf]
        %v287 = vld [vmem:[%s190 + $0xf0] sm:$0xf]
        %v288 = vld [vmem:[%s190 + $0xf4] sm:$0xf]
        %v289 = vld [vmem:[%s190 + $0xf8] sm:$0xf]
        %v290 = vld [vmem:[%s190 + $0xfc] sm:$0xf]
        %v293 = vunpack.c.l.b16 %v225
        %v294 = vunpack.c.h.b16 %v225
        %v295 = vunpack.c.l.b16 %v226
        %v296 = vunpack.c.h.b16 %v226
        %v297 = vpack.c.b16 %v293, %v293
        %v298 = vpack.c.b16 %v294, %v294
        %v299 = vpack.c.b16 %v295, %v295
        %v300 = vpack.c.b16 %v296, %v296
        %v369 = vunpack.c.l.b16 %v227
        %v370 = vunpack.c.l.b16 %v228
        %v371 = vunpack.c.l.b16 %v229
        %v372 = vunpack.c.l.b16 %v230
        %v373 = vunpack.c.l.b16 %v231
        %v374 = vunpack.c.l.b16 %v232
        %v375 = vunpack.c.l.b16 %v233
        %v376 = vunpack.c.l.b16 %v234
        %v377 = vunpack.c.l.b16 %v235
        %v378 = vunpack.c.l.b16 %v236
        %v379 = vunpack.c.l.b16 %v237
        %v380 = vunpack.c.l.b16 %v238
        %v381 = vunpack.c.l.b16 %v239
        %v382 = vunpack.c.l.b16 %v240
        %v383 = vunpack.c.l.b16 %v241
        %v384 = vunpack.c.l.b16 %v242
        %v385 = vunpack.c.l.b16 %v243
        %v386 = vunpack.c.l.b16 %v244
        %v387 = vunpack.c.l.b16 %v245
        %v388 = vunpack.c.l.b16 %v246
        %v389 = vunpack.c.l.b16 %v247
        %v390 = vunpack.c.l.b16 %v248
        %v391 = vunpack.c.l.b16 %v249
        %v392 = vunpack.c.l.b16 %v250
        %v393 = vunpack.c.l.b16 %v251
        %v394 = vunpack.c.l.b16 %v252
        %v395 = vunpack.c.l.b16 %v253
        %v396 = vunpack.c.l.b16 %v254
        %v397 = vunpack.c.l.b16 %v255
        %v398 = vunpack.c.l.b16 %v256
        %v399 = vunpack.c.l.b16 %v257
        %v400 = vunpack.c.l.b16 %v258
        %v401 = vunpack.c.l.b16 %v259
        %v402 = vunpack.c.l.b16 %v260
        %v403 = vunpack.c.l.b16 %v261
        %v404 = vunpack.c.l.b16 %v262
        %v405 = vunpack.c.l.b16 %v263
        %v406 = vunpack.c.l.b16 %v264
        %v407 = vunpack.c.l.b16 %v265
        %v408 = vunpack.c.l.b16 %v266
        %v409 = vunpack.c.l.b16 %v267
        %v410 = vunpack.c.l.b16 %v268
        %v411 = vunpack.c.l.b16 %v269
        %v412 = vunpack.c.l.b16 %v270
        %v413 = vunpack.c.l.b16 %v271
        %v414 = vunpack.c.l.b16 %v272
        %v415 = vunpack.c.l.b16 %v273
        %v416 = vunpack.c.l.b16 %v274
        %v417 = vunpack.c.l.b16 %v275
        %v418 = vunpack.c.l.b16 %v276
        %v419 = vunpack.c.l.b16 %v277
        %v420 = vunpack.c.l.b16 %v278
        %v421 = vunpack.c.l.b16 %v279
        %v422 = vunpack.c.l.b16 %v280
        %v423 = vunpack.c.l.b16 %v281
        %v424 = vunpack.c.l.b16 %v282
        %v425 = vunpack.c.l.b16 %v283
        %v426 = vunpack.c.l.b16 %v284
        %v427 = vunpack.c.l.b16 %v285
        %v428 = vunpack.c.l.b16 %v286
        %v429 = vunpack.c.l.b16 %v287
        %v430 = vunpack.c.l.b16 %v288
        %v431 = vunpack.c.l.b16 %v289
        %v432 = vunpack.c.l.b16 %v290
        %v433 = vpack.c.b16 %v370, %v369
        %v434 = vpack.c.b16 %v372, %v371
        %v435 = vpack.c.b16 %v374, %v373
        %v436 = vpack.c.b16 %v376, %v375
        %v437 = vpack.c.b16 %v378, %v377
        %v438 = vpack.c.b16 %v380, %v379
        %v439 = vpack.c.b16 %v382, %v381
        %v440 = vpack.c.b16 %v384, %v383
        %v441 = vpack.c.b16 %v386, %v385
        %v442 = vpack.c.b16 %v388, %v387
        %v443 = vpack.c.b16 %v390, %v389
        %v444 = vpack.c.b16 %v392, %v391
        %v445 = vpack.c.b16 %v394, %v393
        %v446 = vpack.c.b16 %v396, %v395
        %v447 = vpack.c.b16 %v398, %v397
        %v448 = vpack.c.b16 %v400, %v399
        %v449 = vpack.c.b16 %v402, %v401
        %v450 = vpack.c.b16 %v404, %v403
        %v451 = vpack.c.b16 %v406, %v405
        %v452 = vpack.c.b16 %v408, %v407
        %v453 = vpack.c.b16 %v410, %v409
        %v454 = vpack.c.b16 %v412, %v411
        %v455 = vpack.c.b16 %v414, %v413
        %v456 = vpack.c.b16 %v416, %v415
        %v457 = vpack.c.b16 %v418, %v417
        %v458 = vpack.c.b16 %v420, %v419
        %v459 = vpack.c.b16 %v422, %v421
        %v460 = vpack.c.b16 %v424, %v423
        %v461 = vpack.c.b16 %v426, %v425
        %v462 = vpack.c.b16 %v428, %v427
        %v463 = vpack.c.b16 %v430, %v429
        %v464 = vpack.c.b16 %v432, %v431
        %497 = vmatprep.subr.bf16.mxu0 0
        %498 = vmatpush1.bf16.msra.mxu0 %v433
        %499 = vmatprep.subr.bf16.mxu0 0
        %500 = vmatpush1.bf16.msra.mxu0 %v434
        %501 = vmatprep.subr.bf16.mxu0 0
        %502 = vmatpush1.bf16.msra.mxu0 %v435
        %503 = vmatprep.subr.bf16.mxu0 0
        %504 = vmatpush1.bf16.msra.mxu0 %v436
        %505 = vmatprep.subr.bf16.mxu0 0
        %506 = vmatpush1.bf16.msra.mxu0 %v437
        %507 = vmatprep.subr.bf16.mxu0 0
        %508 = vmatpush1.bf16.msra.mxu0 %v438
        %509 = vmatprep.subr.bf16.mxu0 0
        %510 = vmatpush1.bf16.msra.mxu0 %v439
        %511 = vmatprep.subr.bf16.mxu0 0
        %512 = vmatpush1.bf16.msra.mxu0 %v440
        %513 = vmatprep.subr.bf16.mxu0 0
        %514 = vmatpush1.bf16.msra.mxu0 %v441
        %515 = vmatprep.subr.bf16.mxu0 0
        %516 = vmatpush1.bf16.msra.mxu0 %v442
        %517 = vmatprep.subr.bf16.mxu0 0
        %518 = vmatpush1.bf16.msra.mxu0 %v443
        %519 = vmatprep.subr.bf16.mxu0 0
        %520 = vmatpush1.bf16.msra.mxu0 %v444
        %521 = vmatprep.subr.bf16.mxu0 0
        %522 = vmatpush1.bf16.msra.mxu0 %v445
        %523 = vmatprep.subr.bf16.mxu0 0
        %524 = vmatpush1.bf16.msra.mxu0 %v446
        %525 = vmatprep.subr.bf16.mxu0 0
        %526 = vmatpush1.bf16.msra.mxu0 %v447
        %527 = vmatprep.subr.bf16.mxu0 0
        %528 = vmatpush1.bf16.msra.mxu0 %v448
        %529 = vmatprep.mubr.bf16.mxu0 %v298
        %530 = vmatmul.mubr.bf16.gmra.mrb[0].mxu0 %v297
        %v531 = vpop.f32.mrb[0].mxu0
        %v532 = vadd.f32 0.0, %v531
        %v533 = vpop.f32.mrb[0].mxu0
        %v534 = vpop.f32.mrb[0].mxu0
        %v535 = vpop.f32.mrb[0].mxu0
        %536 = vdwg.mxu0
        %537 = vmatprep.subr.bf16.mxu0 0
        %538 = vmatpush1.bf16.msra.mxu0 %v449
        %539 = vmatprep.subr.bf16.mxu0 0
        %540 = vmatpush1.bf16.msra.mxu0 %v450
        %541 = vmatprep.subr.bf16.mxu0 0
        %542 = vmatpush1.bf16.msra.mxu0 %v451
        %543 = vmatprep.subr.bf16.mxu0 0
        %544 = vmatpush1.bf16.msra.mxu0 %v452
        %545 = vmatprep.subr.bf16.mxu0 0
        %546 = vmatpush1.bf16.msra.mxu0 %v453
        %547 = vmatprep.subr.bf16.mxu0 0
        %548 = vmatpush1.bf16.msra.mxu0 %v454
        %549 = vmatprep.subr.bf16.mxu0 0
        %550 = vmatpush1.bf16.msra.mxu0 %v455
        %551 = vmatprep.subr.bf16.mxu0 0
        %552 = vmatpush1.bf16.msra.mxu0 %v456
        %553 = vmatprep.subr.bf16.mxu0 0
        %554 = vmatpush1.bf16.msra.mxu0 %v457
        %555 = vmatprep.subr.bf16.mxu0 0
        %556 = vmatpush1.bf16.msra.mxu0 %v458
        %557 = vmatprep.subr.bf16.mxu0 0
        %558 = vmatpush1.bf16.msra.mxu0 %v459
        %559 = vmatprep.subr.bf16.mxu0 0
        %560 = vmatpush1.bf16.msra.mxu0 %v460
        %561 = vmatprep.subr.bf16.mxu0 0
        %562 = vmatpush1.bf16.msra.mxu0 %v461
        %563 = vmatprep.subr.bf16.mxu0 0
        %564 = vmatpush1.bf16.msra.mxu0 %v462
        %565 = vmatprep.subr.bf16.mxu0 0
        %566 = vmatpush1.bf16.msra.mxu0 %v463
        %567 = vmatprep.subr.bf16.mxu0 0
        %568 = vmatpush1.bf16.msra.mxu0 %v464
        %569 = vmatprep.mubr.bf16.mxu0 %v300
        %570 = vmatmul.mubr.bf16.gmra.mrb[0].mxu0 %v299
        %v571 = vpop.f32.mrb[0].mxu0
        %v572 = vadd.f32 %v532, %v571
        %v573 = vpop.f32.mrb[0].mxu0
        %v574 = vpop.f32.mrb[0].mxu0
        %v575 = vpop.f32.mrb[0].mxu0
        %576 = vdwg.mxu0
        %v577 = vadd.f32 %v224, %v572
        %578 = vst [vmem:[%s215] sm:$0xff] %v577
        %s579 = sand.u32 %s96, 1
        %s580 = scalar_lea.sflag [#allocation4], %s579
        %s581 = sand.u32 %s96, 1
        %s582 = smul.addr %s581, 8
        %s583 = scalar_lea.vmem [#allocation7], %s582
        // Predicated region
        $region41: #{tpu_custom_call.1} parent=27 // pred_check
          %p584 = pneg %p106
        $region42: #{tpu_custom_call.1} parent=27 // pred_check_branch
          %586 = sbr.rel (%p584) target = $region44
        $region43: #{tpu_custom_call.1} parent=27 // pred_region
          %s588 = ssub.s32 128, 128
          %589 = vsyncadd %s580, %s588
          %s590 = smul.addr %s26, 128
          %s591 = scalar_lea.hbm %s2, %s590
          %s593 = sshll.u32 %s583, 4
          %s594 = int_to_ptr.vmem [resolvable:$true] %s593
          %596 = dma.vmem_to_hbm [thread:$0]  %s594, 128, %s591, %s580
        $region44: #{tpu_custom_call.1} parent=27 // pred_fallthru
          _
      $region28: #{tpu_custom_call.1} parent=5 // pred_fallthru
        _
      %p597 = scmp.le.s32.totalorder 2, %s17
      // Predicated region
      $region45: #{tpu_custom_call.1} parent=5 // pred_check
        %p598 = pneg %p597
      $region46: #{tpu_custom_call.1} parent=5 // pred_check_branch
        %600 = sbr.rel (%p598) target = $region48
      $region47: #{tpu_custom_call.1} parent=5 // pred_region
        %s601 = ssub.s32 %s17, 2
        // Predicated region
        $region49: #{tpu_custom_call.1} parent=47 // pred_check
          %p602 = pneg %p112
        $region50: #{tpu_custom_call.1} parent=47 // pred_check_branch
          %604 = sbr.rel (%p602) target = $region52
        $region51: #{tpu_custom_call.1} parent=47 // pred_region
          %s605 = sand.u32 %s97, 1
          %s606 = scalar_lea.sflag [#allocation4], %s605
          %s607 = sand.u32 %s97, 1
          %s608 = smul.addr %s607, 8
          %s609 = scalar_lea.vmem [#allocation7], %s608
          %610 = dma.done %s606, 128
        $region52: #{tpu_custom_call.1} parent=47 // pred_fallthru
          _
      $region48: #{tpu_custom_call.1} parent=5 // pred_fallthru
        _
    $region6: #{tpu_custom_call.1} parent=1 // loop_footer
      %s21 = sadd.s32 1, %s17
    $region7: #{tpu_custom_call.1} parent=1 // loop_footer_branch
      %16 = sbr.rel target = $region3
    $region8: #{tpu_custom_call.1} parent=1 // loop_exit
      _
    %611 = vsyncpa [#allocation3], 1
    %s612 = scalar_lea.sflag [#allocation3], 1
    %613 = vsyncpa %s612, 1
    %614 = vsyncpa [#allocation6], 1
    %s615 = scalar_lea.sflag [#allocation6], 1
    %616 = vsyncpa %s615, 1
    %617 = vsyncpa [#allocation4], 1
    %s618 = scalar_lea.sflag [#allocation4], 1
    %619 = vsyncpa %s618, 1

</llo_original>
